<compile_context>
chip_gen: v6e
topology: v6e:2x2x1
jax: 0.10.0
libtpu: 0.0.40
codegen_flags: <defaults>
</compile_context>

<pallas_src>
import functools
import math

import jax
import jax.numpy as jnp
from jax import lax
from jax.experimental import pallas as pl
from jax.experimental.pallas import tpu as pltpu


def head_kernel(x_ref, pad_ref, w_ref, o_ref, *, head_size, use_mask,
                batch_block):
    # x_ref:   (Bt, T, 3C)  = [q | k | v] concatenated on the feature axis
    # pad_ref: (B, T) int32 full pad mask (rows for this tile sliced below)
    # w_ref:   (3C, 2H+Ho)  block-diagonal fused projection weight
    # o_ref:   (Bt, T, Ho)
    b0 = pl.program_id(0) * batch_block

    x = x_ref[...]                      # (Bt, T, 3C)
    w = w_ref[...]                      # (3C, 2H+Ho)

    # One fused projection matmul for the whole tile: contracts the 3C axis,
    # so the MXU sees a (Bt*T, 3C) @ (3C, 2H+Ho) pass instead of 3 tiny ones.
    qkv = lax.dot_general(x, w, (((2,), (0,)), ((), ())),
                          preferred_element_type=jnp.float32)  # (Bt, T, 2H+Ho)
    H = head_size
    Q = qkv[..., :H]                    # (Bt, Tq, H)
    K = qkv[..., H:2 * H]               # (Bt, Tk, H)
    V = qkv[..., 2 * H:]                # (Bt, Tk, Ho)

    # scores = Q @ K^T, contracting the head dim (no materialized transpose).
    scores = lax.dot_general(Q, K, (((2,), (2,)), ((0,), (0,))),
                             preferred_element_type=jnp.float32)  # (Bt,Tq,Tk)
    _, Tq, Tk = scores.shape

    if use_mask:
        # torch.tril(ones, diagonal=1) == 0  <=>  col > row + 1 ; fill 1e-9
        row = lax.broadcasted_iota(jnp.int32, (Tq, Tk), 0)
        col = lax.broadcasted_iota(jnp.int32, (Tq, Tk), 1)
        keep = (col <= row + 1)[None, :, :]
        scores = jnp.where(keep, scores, jnp.float32(1e-9))

    # pad_mask.unsqueeze(2).expand(-1, -1, Tk) == 1  -> fill 1e-9
    if batch_block == pad_ref.shape[0]:
        pad = pad_ref[...]                             # (Bt, Tq)
    else:
        pad = pad_ref[pl.ds(b0, batch_block), :]       # (Bt, Tq)
    scores = jnp.where(pad[:, :, None] == 1, jnp.float32(1e-9), scores)

    # softmax(scores * head_size**-0.5, axis=-1) — exact f32 arithmetic.
    s = scores * jnp.float32(head_size ** (-0.5))
    m = jnp.max(s, axis=-1, keepdims=True)
    e = jnp.exp(s - m)
    wgt = e / jnp.sum(e, axis=-1, keepdims=True)

    # context vectors: attention_weights @ V
    ctx = lax.dot_general(wgt, V, (((2,), (1,)), ((0,), (0,))),
                          preferred_element_type=jnp.float32)   # (Bt, Tq, Ho)
    o_ref[...] = ctx.astype(o_ref.dtype)


def head_forward(q, k, v, pad_mask, wq_t, wk_t, wv_t, *, head_size, mask=True,
                 batch_block=None):
    """q,k,v: (B,T,C) f32; pad_mask: (B,T) {0,1}; w*_t: (C, out) f32."""
    B, Tq, C = q.shape
    _, Tk, _ = k.shape
    if Tq != Tk:
        raise ValueError("fused-QKV kernel path assumes T_q == T_k")
    H = wq_t.shape[1]
    Ho = wv_t.shape[1]

    if batch_block is None:
        batch_block = B           # one grid step: amortize per-step overhead
    assert B % batch_block == 0, "batch_block must divide B"
    num_tiles = B // batch_block

    # Wrapper-side glue: fused activations + block-diagonal fused weight so
    # x_cat @ w_fused == [q@Wq | k@Wk | v@Wv]  (zero blocks add exact zeros).
    x_cat = jnp.concatenate([q, k, v], axis=-1).astype(jnp.float32)  # (B,T,3C)
    w_fused = jnp.zeros((3 * C, 2 * H + Ho), jnp.float32)
    w_fused = w_fused.at[0:C, 0:H].set(wq_t)
    w_fused = w_fused.at[C:2 * C, H:2 * H].set(wk_t)
    w_fused = w_fused.at[2 * C:, 2 * H:].set(wv_t)
    pad_i = pad_mask.astype(jnp.int32)                               # (B, T)

    kernel = functools.partial(head_kernel, head_size=head_size,
                               use_mask=mask, batch_block=batch_block)

    return pl.pallas_call(
        kernel,
        out_shape=jax.ShapeDtypeStruct((B, Tq, Ho), jnp.float32),
        grid_spec=pltpu.PrefetchScalarGridSpec(
            num_scalar_prefetch=0,
            grid=(num_tiles,),
            in_specs=[
                pl.BlockSpec((batch_block, Tq, 3 * C), lambda b: (b, 0, 0)),
                pl.BlockSpec((B, Tq), lambda b: (0, 0)),        # full pad mask
                pl.BlockSpec((3 * C, 2 * H + Ho), lambda b: (0, 0)),
            ],
            out_specs=pl.BlockSpec((batch_block, Tq, Ho), lambda b: (b, 0, 0)),
        ),
        compiler_params=pltpu.CompilerParams(
            dimension_semantics=("parallel",)),
    )(x_cat, pad_i, w_fused)


def head_reference(q, k, v, pad_mask, wq_t, wk_t, wv_t, *, head_size, mask=True):
    """Pure-JAX reference mirroring the PyTorch forward exactly."""
    Q = q @ wq_t
    K = k @ wk_t
    V = v @ wv_t
    scores = jnp.einsum('bqh,bkh->bqk', Q, K)
    Tq, Tk = scores.shape[1], scores.shape[2]
    if mask:
        tril = jnp.tril(jnp.ones((Tq, Tk), jnp.float32), k=1)
        scores = jnp.where(tril == 0, jnp.float32(1e-9), scores)
    scores = jnp.where(pad_mask[:, :, None] == 1, jnp.float32(1e-9), scores)
    w = jax.nn.softmax(scores * head_size ** (-0.5), axis=-1)
    return w @ V


if __name__ == "__main__":
    # Small shapes consistent with the module.
    B = 2
    context_length = 8          # T_q == T_k == context_length
    T = context_length
    head_input_dimension = 32   # C
    head_size = 16              # H
    head_output_dimension = 16  # Ho

    key = jax.random.PRNGKey(0)
    kq, kk, kv, kwq, kwk, kwv, kpad = jax.random.split(key, 7)

    q = jax.random.normal(kq, (B, T, head_input_dimension), jnp.float32)
    k = jax.random.normal(kk, (B, T, head_input_dimension), jnp.float32)
    v = jax.random.normal(kv, (B, T, head_input_dimension), jnp.float32)
    pad_mask = jax.random.bernoulli(kpad, 0.25, (B, T)).astype(jnp.int32)

    # Deterministic nn.Linear-style weights (no bias), passed as (in, out).
    scale = 1.0 / math.sqrt(head_input_dimension)
    wq_t = scale * jax.random.normal(
        kwq, (head_input_dimension, head_size), jnp.float32)
    wk_t = scale * jax.random.normal(
        kwk, (head_input_dimension, head_size), jnp.float32)
    wv_t = scale * jax.random.normal(
        kwv, (head_input_dimension, head_output_dimension), jnp.float32)

    out = head_forward(q, k, v, pad_mask, wq_t, wk_t, wv_t,
                       head_size=head_size, mask=True)
    out = jax.block_until_ready(out)

    ref = head_reference(q, k, v, pad_mask, wq_t, wk_t, wv_t,
                         head_size=head_size, mask=True)

    assert out.shape == (B, T, head_output_dimension)
    assert jnp.allclose(out, ref, atol=1e-5, rtol=1e-5), (
        f"max abs err = {jnp.max(jnp.abs(out - ref))}")

    print("KERNEL_OK")
</pallas_src>

<mosaic_0001>
module attributes {stable_mosaic.version = 11 : i64} {
  func.func @head_kernel(%arg0: i32, %arg1: memref<2x8x96xf32, #tpu.memory_space<vmem>>, %arg2: memref<2x8xi32, #tpu.memory_space<vmem>>, %arg3: memref<96x48xf32, #tpu.memory_space<vmem>>, %arg4: memref<2x8x16xf32, #tpu.memory_space<vmem>>) attributes {dimension_semantics = [#tpu.dimension_semantics<parallel>], iteration_bounds = array<i64: 1>, scalar_prefetch = 0 : i64, scratch_operands = 0 : i64, tpu.core_type = #tpu.core_type<tc>, window_params = [{transform_indices = @transform_0, window_bounds = array<i64: 2, 8, 96>}, {pipeline_mode = #tpu.pipeline_mode<synchronous>, transform_indices = @transform_1, window_bounds = array<i64: 2, 8>}, {pipeline_mode = #tpu.pipeline_mode<synchronous>, transform_indices = @transform_2, window_bounds = array<i64: 96, 48>}, {transform_indices = @transform_3, window_bounds = array<i64: 2, 8, 16>}]} {
    %c0 = arith.constant 0 : index
    %c0_0 = arith.constant 0 : index
    %c0_1 = arith.constant 0 : index
    %0 = vector.load %arg1[%c0, %c0_0, %c0_1] : memref<2x8x96xf32, #tpu.memory_space<vmem>>, vector<2x8x96xf32>
    %c0_2 = arith.constant 0 : index
    %c0_3 = arith.constant 0 : index
    %1 = vector.load %arg3[%c0_2, %c0_3] : memref<96x48xf32, #tpu.memory_space<vmem>>, vector<96x48xf32>
    %cst = arith.constant dense<0.000000e+00> : vector<2x8x48xf32>
    %2 = tpu.matmul %0, %1, %cst {dimension_numbers = #tpu.dot_dimension_numbers<[2], [0], [0, 1], [1], [0, 0, 0, 1, 1, 1], [], []>} : vector<2x8x96xf32>, vector<96x48xf32>, vector<2x8x48xf32> -> vector<2x8x48xf32>
    %3 = vector.extract_strided_slice %2 {offsets = [0, 0, 0], sizes = [2, 8, 16], strides = [1, 1, 1]} : vector<2x8x48xf32> to vector<2x8x16xf32>
    %4 = vector.extract_strided_slice %2 {offsets = [0, 0, 16], sizes = [2, 8, 16], strides = [1, 1, 1]} : vector<2x8x48xf32> to vector<2x8x16xf32>
    %5 = vector.extract_strided_slice %2 {offsets = [0, 0, 32], sizes = [2, 8, 16], strides = [1, 1, 1]} : vector<2x8x48xf32> to vector<2x8x16xf32>
    %cst_4 = arith.constant dense<0.000000e+00> : vector<2x8x8xf32>
    %6 = tpu.matmul %3, %4, %cst_4 {dimension_numbers = #tpu.dot_dimension_numbers<[2], [2], [1], [1], [0, 0, 0, 1, 1, 1], [0], [0]>} : vector<2x8x16xf32>, vector<2x8x16xf32>, vector<2x8x8xf32> -> vector<2x8x8xf32>
    %7 = tpu.iota {dimensions = array<i32: 0>} : vector<8x8xi32>
    %8 = tpu.iota {dimensions = array<i32: 1>} : vector<8x8xi32>
    %c1_i32 = arith.constant 1 : i32
    %9 = vector.broadcast %c1_i32 : i32 to vector<8x8xi32>
    %10 = arith.addi %7, %9 : vector<8x8xi32>
    %11 = arith.cmpi sle, %8, %10 : vector<8x8xi32>
    %12 = vector.shape_cast %11 : vector<8x8xi1> to vector<1x8x8xi1>
    %cst_5 = arith.constant 9.99999971E-10 : f32
    %13 = vector.shape_cast %12 : vector<1x8x8xi1> to vector<1x8x8xi1>
    %14 = vector.broadcast %13 : vector<1x8x8xi1> to vector<2x8x8xi1>
    %15 = vector.broadcast %cst_5 : f32 to vector<2x8x8xf32>
    %16 = arith.select %14, %6, %15 : vector<2x8x8xi1>, vector<2x8x8xf32>
    %c0_6 = arith.constant 0 : index
    %c0_7 = arith.constant 0 : index
    %17 = vector.load %arg2[%c0_6, %c0_7] : memref<2x8xi32, #tpu.memory_space<vmem>>, vector<2x8xi32>
    %18 = vector.shape_cast %17 : vector<2x8xi32> to vector<2x8x1xi32>
    %c1_i32_8 = arith.constant 1 : i32
    %19 = vector.broadcast %c1_i32_8 : i32 to vector<2x8x1xi32>
    %20 = arith.cmpi eq, %18, %19 : vector<2x8x1xi32>
    %cst_9 = arith.constant 9.99999971E-10 : f32
    %21 = vector.shape_cast %20 : vector<2x8x1xi1> to vector<2x8x1xi1>
    %22 = vector.broadcast %21 : vector<2x8x1xi1> to vector<2x8x8xi1>
    %23 = vector.broadcast %cst_9 : f32 to vector<2x8x8xf32>
    %24 = arith.select %22, %23, %16 : vector<2x8x8xi1>, vector<2x8x8xf32>
    %cst_10 = arith.constant 2.500000e-01 : f32
    %25 = vector.broadcast %cst_10 : f32 to vector<2x8x8xf32>
    %26 = arith.mulf %24, %25 : vector<2x8x8xf32>
    %cst_11 = arith.constant dense<0xFF800000> : vector<2x8xf32>
    %27 = vector.multi_reduction <maximumf>, %26, %cst_11 [2] : vector<2x8x8xf32> to vector<2x8xf32>
    %28 = vector.shape_cast %27 : vector<2x8xf32> to vector<2x8x1xf32>
    %29 = vector.broadcast %28 : vector<2x8x1xf32> to vector<2x8x8xf32>
    %30 = arith.subf %26, %29 : vector<2x8x8xf32>
    %31 = math.exp %30 : vector<2x8x8xf32>
    %cst_12 = arith.constant dense<0.000000e+00> : vector<2x8xf32>
    %32 = vector.multi_reduction <add>, %31, %cst_12 [2] : vector<2x8x8xf32> to vector<2x8xf32>
    %33 = vector.shape_cast %32 : vector<2x8xf32> to vector<2x8x1xf32>
    %34 = vector.broadcast %33 : vector<2x8x1xf32> to vector<2x8x8xf32>
    %35 = arith.divf %31, %34 : vector<2x8x8xf32>
    %cst_13 = arith.constant dense<0.000000e+00> : vector<2x8x16xf32>
    %36 = tpu.matmul %35, %5, %cst_13 {dimension_numbers = #tpu.dot_dimension_numbers<[2], [1], [1], [2], [0, 0, 0, 1, 1, 2], [0], [0]>} : vector<2x8x8xf32>, vector<2x8x16xf32>, vector<2x8x16xf32> -> vector<2x8x16xf32>
    %c0_14 = arith.constant 0 : index
    %c0_15 = arith.constant 0 : index
    %c0_16 = arith.constant 0 : index
    %37 = vector.load %arg4[%c0_14, %c0_15, %c0_16] : memref<2x8x16xf32, #tpu.memory_space<vmem>>, vector<2x8x16xf32>
    tpu.vector_store %arg4[%c0_14, %c0_15, %c0_16], %36 {strides = array<i32>} : memref<2x8x16xf32, #tpu.memory_space<vmem>>, vector<2x8x16xf32>,
    return
  }
  func.func @transform_0(%arg0: i32) -> (i32, i32, i32) {
    %c0_i32 = arith.constant 0 : i32
    %c0_i32_0 = arith.constant 0 : i32
    %c0_i32_1 = arith.constant 0 : i32
    return %arg0, %c0_i32, %c0_i32_0 : i32, i32, i32
  }
  func.func @transform_1(%arg0: i32) -> (i32, i32) {
    %c0_i32 = arith.constant 0 : i32
    %c0_i32_0 = arith.constant 0 : i32
    %c0_i32_1 = arith.constant 0 : i32
    return %c0_i32, %c0_i32_0 : i32, i32
  }
  func.func @transform_2(%arg0: i32) -> (i32, i32) {
    %c0_i32 = arith.constant 0 : i32
    %c0_i32_0 = arith.constant 0 : i32
    %c0_i32_1 = arith.constant 0 : i32
    return %c0_i32, %c0_i32_0 : i32, i32
  }
  func.func @transform_3(%arg0: i32) -> (i32, i32, i32) {
    %c0_i32 = arith.constant 0 : i32
    %c0_i32_0 = arith.constant 0 : i32
    %c0_i32_1 = arith.constant 0 : i32
    return %arg0, %c0_i32, %c0_i32_0 : i32, i32, i32
  }
}

</mosaic_0001>

<llo_original>
// kernel: tpu_custom_call.1
$region0: #{tpu_custom_call.1}
  #allocation0 [shape = 'u32[]', space=smem, size = 0x4, offset = 0x4, fixed_abs, tag = 'smem constant byte address 0x4 - core index']
  #allocation1 [shape = 'u32[144,128]{1,0:T(1,128)}', space=vmem, size = 0x12000, scoped, tag = 'internal scratch']
  %s0 = inlined_call_operand.vmem [shape: f32[2,8,96], index: 0, kind: input, shape index: {}]
  %s1 = inlined_call_operand.vmem [shape: s32[2,8], index: 1, kind: input, shape index: {}]
  %s2 = inlined_call_operand.vmem [shape: f32[96,48], index: 2, kind: input, shape index: {}]
  %s3 = inlined_call_operand.hbm [shape: f32[2,8,16], index: 3, kind: output, shape index: {}]
  %s4 = sld [smem:[#allocation0]]
  $region22: #{tpu_custom_call.1} parent=0
    _
  %s6 = ssub.s32 1, %s4
  %s7 = scalar_select 0, %s6, %s4
  $region1: #{tpu_custom_call.1} parent=0
    #allocation2 [shape = 'u8[8192]{0}', space=vmem, size = 0x2000, scoped, tag = 'output window, operand 0, single buffered']
    #allocation3 [shape = 's32[1]{0}', space=sflag, size = 0x4, scoped, tag = 'scoped memory for tpu_custom_call.1']
    %8 = vsyncpa [#allocation3], 0
    // Predicated region
    $region2: #{tpu_custom_call.1} parent=1 // pred_check
      _
    $region3: #{tpu_custom_call.1} parent=1 // pred_check_branch
      %10 = sbr.rel (0) target = $region5
    $region4: #{tpu_custom_call.1} parent=1 // pred_region
      _
    $region5: #{tpu_custom_call.1} parent=1 // pred_fallthru
      _
    // Predicated region
    $region6: #{tpu_custom_call.1} parent=1 // pred_check
      _
    $region7: #{tpu_custom_call.1} parent=1 // pred_check_branch
      %12 = sbr.rel (0) target = $region9
    $region8: #{tpu_custom_call.1} parent=1 // pred_region
      _
    $region9: #{tpu_custom_call.1} parent=1 // pred_fallthru
      _
    // Predicated region
    $region10: #{tpu_custom_call.1} parent=1 // pred_check
      _
    $region11: #{tpu_custom_call.1} parent=1 // pred_check_branch
      %14 = sbr.rel (0) target = $region13
    $region12: #{tpu_custom_call.1} parent=1 // pred_region
      _
    $region13: #{tpu_custom_call.1} parent=1 // pred_fallthru
      _
    %v15 = vld [vmem:[%s0] sm:$0xff]
    %v16 = vld [vmem:[%s0 + $0x8] sm:$0xff]
    %v17 = vld [vmem:[%s2] sm:$0xff]
    %v18 = vld [vmem:[%s2 + $0x8] sm:$0xff]
    %v19 = vld [vmem:[%s2 + $0x10] sm:$0xff]
    %v20 = vld [vmem:[%s2 + $0x18] sm:$0xff]
    %v21 = vld [vmem:[%s2 + $0x20] sm:$0xff]
    %v22 = vld [vmem:[%s2 + $0x28] sm:$0xff]
    %v23 = vld [vmem:[%s2 + $0x30] sm:$0xff]
    %v24 = vld [vmem:[%s2 + $0x38] sm:$0xff]
    %v25 = vld [vmem:[%s2 + $0x40] sm:$0xff]
    %v26 = vld [vmem:[%s2 + $0x48] sm:$0xff]
    %v27 = vld [vmem:[%s2 + $0x50] sm:$0xff]
    %v28 = vld [vmem:[%s2 + $0x58] sm:$0xff]
    %vm29 = vcmask 785408
    %v31 = vsel %vm29, %v15, 0
    %v34 = vsel %vm29, %v16, 0
    %36 = vmatprep.subr.mxu0 0.0
    %37 = vmatpush1.msra.mxu0 0.0
    %38 = vmatprep.subr.mxu0 0.0
    %39 = vmatpush1.msra.mxu0 0.0
    %40 = vmatprep.subr.mxu0 0.0
    %41 = vmatpush1.msra.mxu0 0.0
    %42 = vmatprep.subr.mxu0 0.0
    %43 = vmatpush1.msra.mxu0 0.0
    %44 = vmatprep.subr.mxu0 0.0
    %45 = vmatpush1.msra.mxu0 %v28
    %46 = vmatprep.subr.mxu0 0.0
    %47 = vmatpush1.msra.mxu0 %v27
    %48 = vmatprep.subr.mxu0 0.0
    %49 = vmatpush1.msra.mxu0 %v26
    %50 = vmatprep.subr.mxu0 0.0
    %51 = vmatpush1.msra.mxu0 %v25
    %52 = vmatprep.subr.mxu0 0.0
    %53 = vmatpush1.msra.mxu0 %v24
    %54 = vmatprep.subr.mxu0 0.0
    %55 = vmatpush1.msra.mxu0 %v23
    %56 = vmatprep.subr.mxu0 0.0
    %57 = vmatpush1.msra.mxu0 %v22
    %58 = vmatprep.subr.mxu0 0.0
    %59 = vmatpush1.msra.mxu0 %v21
    %60 = vmatprep.subr.mxu0 0.0
    %61 = vmatpush1.msra.mxu0 %v20
    %62 = vmatprep.subr.mxu0 0.0
    %63 = vmatpush1.msra.mxu0 %v19
    %64 = vmatprep.subr.mxu0 0.0
    %65 = vmatpush1.msra.mxu0 %v18
    %66 = vmatprep.subr.mxu0 0.0
    %67 = vmatpush1.msra.mxu0 %v17
    %68 = vmatprep.subr.mxu0 0.0
    %69 = vmatpush2.msra.mxu0 0.0
    %70 = vmatprep.subr.mxu0 0.0
    %71 = vmatpush2.msra.mxu0 0.0
    %72 = vmatprep.subr.mxu0 0.0
    %73 = vmatpush2.msra.mxu0 0.0
    %74 = vmatprep.subr.mxu0 0.0
    %75 = vmatpush2.msra.mxu0 0.0
    %76 = vmatprep.subr.mxu0 0.0
    %77 = vmatpush2.msra.mxu0 0.0
    %78 = vmatprep.subr.mxu0 0.0
    %79 = vmatpush2.msra.mxu0 0.0
    %80 = vmatprep.subr.mxu0 0.0
    %81 = vmatpush2.msra.mxu0 0.0
    %82 = vmatprep.subr.mxu0 0.0
    %83 = vmatpush2.msra.mxu0 0.0
    %84 = vmatprep.subr.mxu0 0.0
    %85 = vmatpush2.msra.mxu0 0.0
    %86 = vmatprep.subr.mxu0 0.0
    %87 = vmatpush2.msra.mxu0 0.0
    %88 = vmatprep.subr.mxu0 0.0
    %89 = vmatpush2.msra.mxu0 0.0
    %90 = vmatprep.subr.mxu0 0.0
    %91 = vmatpush2.msra.mxu0 0.0
    %92 = vmatprep.subr.mxu0 0.0
    %93 = vmatpush2.msra.mxu0 0.0
    %94 = vmatprep.subr.mxu0 0.0
    %95 = vmatpush2.msra.mxu0 0.0
    %96 = vmatprep.subr.mxu0 0.0
    %97 = vmatpush2.msra.mxu0 0.0
    %98 = vmatprep.subr.mxu0 0.0
    %99 = vmatpush2.msra.mxu0 0.0
    %100 = vmatprep.mubr.f32.mxu0 0.0
    %101 = vmatmul.mubr.f32.gmra.mxu0 %v31
    %v102 = vpop.f32.mrf.mxu0
    %v103 = vadd.f32 0.0, %v102
    %v104 = vpop.f32.mrf.mxu0
    %105 = vmatprep.mubr.f32.mxu0 0.0
    %106 = vmatmul.mubr.f32.gmra.mxu0 %v34
    %v107 = vpop.f32.mrf.mxu0
    %v108 = vadd.f32 0.0, %v107
    %v109 = vpop.f32.mrf.mxu0
    %110 = vdwg.mxu0
    %112 = vrot.lane.b32.xlu0 %v103, 112
    %v113 = vpop.permute.xlu0 %112
    %vm114 = vcmask 130048
    %v115 = vsel %vm114, %v103, 0
    %v117 = vsel %vm114, %v113, 0
    %119 = vmatprep.subr.mxu0 0.0
    %120 = vmatpush1.xpose.msra.mxu0 0.0
    %121 = vmatprep.subr.mxu0 0.0
    %122 = vmatpush1.xpose.msra.mxu0 0.0
    %123 = vmatprep.subr.mxu0 0.0
    %124 = vmatpush1.xpose.msra.mxu0 0.0
    %125 = vmatprep.subr.mxu0 0.0
    %126 = vmatpush1.xpose.msra.mxu0 0.0
    %127 = vmatprep.subr.mxu0 0.0
    %128 = vmatpush1.xpose.msra.mxu0 0.0
    %129 = vmatprep.subr.mxu0 0.0
    %130 = vmatpush1.xpose.msra.mxu0 0.0
    %131 = vmatprep.subr.mxu0 0.0
    %132 = vmatpush1.xpose.msra.mxu0 0.0
    %133 = vmatprep.subr.mxu0 0.0
    %134 = vmatpush1.xpose.msra.mxu0 0.0
    %135 = vmatprep.subr.mxu0 0.0
    %136 = vmatpush1.xpose.msra.mxu0 0.0
    %137 = vmatprep.subr.mxu0 0.0
    %138 = vmatpush1.xpose.msra.mxu0 0.0
    %139 = vmatprep.subr.mxu0 0.0
    %140 = vmatpush1.xpose.msra.mxu0 0.0
    %141 = vmatprep.subr.mxu0 0.0
    %142 = vmatpush1.xpose.msra.mxu0 0.0
    %143 = vmatprep.subr.mxu0 0.0
    %144 = vmatpush1.xpose.msra.mxu0 0.0
    %145 = vmatprep.subr.mxu0 0.0
    %146 = vmatpush1.xpose.msra.mxu0 0.0
    %147 = vmatprep.subr.mxu0 0.0
    %148 = vmatpush1.xpose.msra.mxu0 0.0
    %149 = vmatprep.subr.mxu0 0.0
    %150 = vmatpush1.xpose.msra.mxu0 %v117
    %151 = vmatprep.subr.mxu0 0.0
    %152 = vmatpush2.xpose.msra.mxu0 0.0
    %153 = vmatprep.subr.mxu0 0.0
    %154 = vmatpush2.xpose.msra.mxu0 0.0
    %155 = vmatprep.subr.mxu0 0.0
    %156 = vmatpush2.xpose.msra.mxu0 0.0
    %157 = vmatprep.subr.mxu0 0.0
    %158 = vmatpush2.xpose.msra.mxu0 0.0
    %159 = vmatprep.subr.mxu0 0.0
    %160 = vmatpush2.xpose.msra.mxu0 0.0
    %161 = vmatprep.subr.mxu0 0.0
    %162 = vmatpush2.xpose.msra.mxu0 0.0
    %163 = vmatprep.subr.mxu0 0.0
    %164 = vmatpush2.xpose.msra.mxu0 0.0
    %165 = vmatprep.subr.mxu0 0.0
    %166 = vmatpush2.xpose.msra.mxu0 0.0
    %167 = vmatprep.subr.mxu0 0.0
    %168 = vmatpush2.xpose.msra.mxu0 0.0
    %169 = vmatprep.subr.mxu0 0.0
    %170 = vmatpush2.xpose.msra.mxu0 0.0
    %171 = vmatprep.subr.mxu0 0.0
    %172 = vmatpush2.xpose.msra.mxu0 0.0
    %173 = vmatprep.subr.mxu0 0.0
    %174 = vmatpush2.xpose.msra.mxu0 0.0
    %175 = vmatprep.subr.mxu0 0.0
    %176 = vmatpush2.xpose.msra.mxu0 0.0
    %177 = vmatprep.subr.mxu0 0.0
    %178 = vmatpush2.xpose.msra.mxu0 0.0
    %179 = vmatprep.subr.mxu0 0.0
    %180 = vmatpush2.xpose.msra.mxu0 0.0
    %181 = vmatprep.subr.mxu0 0.0
    %182 = vmatpush2.xpose.msra.mxu0 0.0
    %183 = vmatprep.mubr.f32.mxu0 0.0
    %184 = vmatmul.mubr.f32.gmra.mxu0 %v115
    %v185 = vpop.f32.mrf.mxu0
    %v186 = vadd.f32 0.0, %v185
    %v187 = vpop.f32.mrf.mxu0
    %188 = vdwg.mxu0
    %190 = vrot.lane.b32.xlu0 %v108, 112
    %v191 = vpop.permute.xlu0 %190
    %v192 = vsel %vm114, %v108, 0
    %v194 = vsel %vm114, %v191, 0
    %196 = vmatprep.subr.mxu0 0.0
    %197 = vmatpush1.xpose.msra.mxu0 0.0
    %198 = vmatprep.subr.mxu0 0.0
    %199 = vmatpush1.xpose.msra.mxu0 0.0
    %200 = vmatprep.subr.mxu0 0.0
    %201 = vmatpush1.xpose.msra.mxu0 0.0
    %202 = vmatprep.subr.mxu0 0.0
    %203 = vmatpush1.xpose.msra.mxu0 0.0
    %204 = vmatprep.subr.mxu0 0.0
    %205 = vmatpush1.xpose.msra.mxu0 0.0
    %206 = vmatprep.subr.mxu0 0.0
    %207 = vmatpush1.xpose.msra.mxu0 0.0
    %208 = vmatprep.subr.mxu0 0.0
    %209 = vmatpush1.xpose.msra.mxu0 0.0
    %210 = vmatprep.subr.mxu0 0.0
    %211 = vmatpush1.xpose.msra.mxu0 0.0
    %212 = vmatprep.subr.mxu0 0.0
    %213 = vmatpush1.xpose.msra.mxu0 0.0
    %214 = vmatprep.subr.mxu0 0.0
    %215 = vmatpush1.xpose.msra.mxu0 0.0
    %216 = vmatprep.subr.mxu0 0.0
    %217 = vmatpush1.xpose.msra.mxu0 0.0
    %218 = vmatprep.subr.mxu0 0.0
    %219 = vmatpush1.xpose.msra.mxu0 0.0
    %220 = vmatprep.subr.mxu0 0.0
    %221 = vmatpush1.xpose.msra.mxu0 0.0
    %222 = vmatprep.subr.mxu0 0.0
    %223 = vmatpush1.xpose.msra.mxu0 0.0
    %224 = vmatprep.subr.mxu0 0.0
    %225 = vmatpush1.xpose.msra.mxu0 0.0
    %226 = vmatprep.subr.mxu0 0.0
    %227 = vmatpush1.xpose.msra.mxu0 %v194
    %228 = vmatprep.subr.mxu0 0.0
    %229 = vmatpush2.xpose.msra.mxu0 0.0
    %230 = vmatprep.subr.mxu0 0.0
    %231 = vmatpush2.xpose.msra.mxu0 0.0
    %232 = vmatprep.subr.mxu0 0.0
    %233 = vmatpush2.xpose.msra.mxu0 0.0
    %234 = vmatprep.subr.mxu0 0.0
    %235 = vmatpush2.xpose.msra.mxu0 0.0
    %236 = vmatprep.subr.mxu0 0.0
    %237 = vmatpush2.xpose.msra.mxu0 0.0
    %238 = vmatprep.subr.mxu0 0.0
    %239 = vmatpush2.xpose.msra.mxu0 0.0
    %240 = vmatprep.subr.mxu0 0.0
    %241 = vmatpush2.xpose.msra.mxu0 0.0
    %242 = vmatprep.subr.mxu0 0.0
    %243 = vmatpush2.xpose.msra.mxu0 0.0
    %244 = vmatprep.subr.mxu0 0.0
    %245 = vmatpush2.xpose.msra.mxu0 0.0
    %246 = vmatprep.subr.mxu0 0.0
    %247 = vmatpush2.xpose.msra.mxu0 0.0
    %248 = vmatprep.subr.mxu0 0.0
    %249 = vmatpush2.xpose.msra.mxu0 0.0
    %250 = vmatprep.subr.mxu0 0.0
    %251 = vmatpush2.xpose.msra.mxu0 0.0
    %252 = vmatprep.subr.mxu0 0.0
    %253 = vmatpush2.xpose.msra.mxu0 0.0
    %254 = vmatprep.subr.mxu0 0.0
    %255 = vmatpush2.xpose.msra.mxu0 0.0
    %256 = vmatprep.subr.mxu0 0.0
    %257 = vmatpush2.xpose.msra.mxu0 0.0
    %258 = vmatprep.subr.mxu0 0.0
    %259 = vmatpush2.xpose.msra.mxu0 0.0
    %260 = vmatprep.mubr.f32.mxu0 0.0
    %261 = vmatmul.mubr.f32.gmra.mxu0 %v192
    %v262 = vpop.f32.mrf.mxu0
    %v263 = vadd.f32 0.0, %v262
    %v264 = vpop.f32.mrf.mxu0
    %265 = vdwg.mxu0
    %v266 = vlaneseq
    %v267 = vshrl.u32 %v266, 7
    %v268 = vlaneseq
    %v269 = vand.u32 %v268, 127
    %v270 = vadd.s32 %v267, 1
    %vm271 = vcmp.le.s32.totalorder %v269, %v270
    %v272 = vsel %vm271, 1, 0
    %vm273 = vcmp.eq.s32.totalorder %v272, 1
    %v274 = vsel %vm273, %v186, 1e-09
    %v275 = vsel %vm273, %v263, 1e-09
    %v276 = vld [vmem:[%s1] sm:$0x3]
    %v277 = vlaneseq
    %v278 = vshrl.u32 %v277, 7
    %v279 = vsub.s32 0, %v278
    %v280 = vrot.slane %v276, %v279
    %282 = vbcast.lane.b32.xlu0 %v280, 256
    %v283 = vpop.permute.xlu0 %282
    %v284 = vlaneseq
    %v285 = vshrl.u32 %v284, 7
    %v286 = vsub.s32 1, %v285
    %v287 = vrot.slane %v276, %v286
    %289 = vbcast.lane.b32.xlu0 %v287, 256
    %v290 = vpop.permute.xlu0 %289
    %vm291 = vcmp.eq.s32.totalorder %v283, 1
    %vm292 = vcmp.eq.s32.totalorder %v290, 1
    %v293 = vsel %vm291, 1, 0
    %v294 = vsel %vm292, 1, 0
    %vm295 = vcmp.eq.s32.totalorder %v293, 1
    %vm296 = vcmp.eq.s32.totalorder %v294, 1
    %v297 = vsel %vm295, 1e-09, %v274
    %v298 = vsel %vm296, 1e-09, %v275
    %v299 = vmul.f32 %v297, 0.25
    %v300 = vmul.f32 %v298, 0.25
    %vm301 = vcmask 64512
    %v302 = vsel %vm301, %v299, -inf
    %303 = vmax.xlane.f32.xlu0 %v302
    %v304 = vpop.xlane.xlu0 %303
    %v305 = vsel %vm301, %v300, -inf
    %306 = vmax.xlane.f32.xlu0 %v305
    %v307 = vpop.xlane.xlu0 %306
    %v308 = vsub.f32 %v299, %v304
    %v309 = vsub.f32 %v300, %v307
    %v310 = vmul.f32 %v308, 1.442695
    %v311 = vpow.pop %v310
    %v312 = vmul.f32 %v309, 1.442695
    %v313 = vpow.pop %v312
    %v314 = vsel %vm301, %v311, 0.0
    %315 = vadd.xlane.f32.xlu0 %v314
    %v316 = vpop.xlane.xlu0 %315
    %v317 = vsel %vm301, %v313, 0.0
    %318 = vadd.xlane.f32.xlu0 %v317
    %v319 = vpop.xlane.xlu0 %318
    %v320 = vrcp.pop %v316
    %v321 = vmul.f32 %v311, %v320
    %v322 = vrcp.pop %v319
    %v323 = vmul.f32 %v313, %v322
    %324 = vrot.lane.b32.xlu0 %v103, 96
    %v325 = vpop.permute.xlu0 %324
    %v328 = vsel %vm301, %v321, 0
    %330 = vmatprep.subr.mxu0 0.0
    %331 = vmatpush1.msra.mxu0 0.0
    %332 = vmatprep.subr.mxu0 0.0
    %333 = vmatpush1.msra.mxu0 0.0
    %334 = vmatprep.subr.mxu0 0.0
    %335 = vmatpush1.msra.mxu0 0.0
    %336 = vmatprep.subr.mxu0 0.0
    %337 = vmatpush1.msra.mxu0 0.0
    %338 = vmatprep.subr.mxu0 0.0
    %339 = vmatpush1.msra.mxu0 0.0
    %340 = vmatprep.subr.mxu0 0.0
    %341 = vmatpush1.msra.mxu0 0.0
    %342 = vmatprep.subr.mxu0 0.0
    %343 = vmatpush1.msra.mxu0 0.0
    %344 = vmatprep.subr.mxu0 0.0
    %345 = vmatpush1.msra.mxu0 0.0
    %346 = vmatprep.subr.mxu0 0.0
    %347 = vmatpush1.msra.mxu0 0.0
    %348 = vmatprep.subr.mxu0 0.0
    %349 = vmatpush1.msra.mxu0 0.0
    %350 = vmatprep.subr.mxu0 0.0
    %351 = vmatpush1.msra.mxu0 0.0
    %352 = vmatprep.subr.mxu0 0.0
    %353 = vmatpush1.msra.mxu0 0.0
    %354 = vmatprep.subr.mxu0 0.0
    %355 = vmatpush1.msra.mxu0 0.0
    %356 = vmatprep.subr.mxu0 0.0
    %357 = vmatpush1.msra.mxu0 0.0
    %358 = vmatprep.subr.mxu0 0.0
    %359 = vmatpush1.msra.mxu0 0.0
    %360 = vmatprep.subr.mxu0 0.0
    %361 = vmatpush1.msra.mxu0 %v325
    %362 = vmatprep.subr.mxu0 0.0
    %363 = vmatpush2.msra.mxu0 0.0
    %364 = vmatprep.subr.mxu0 0.0
    %365 = vmatpush2.msra.mxu0 0.0
    %366 = vmatprep.subr.mxu0 0.0
    %367 = vmatpush2.msra.mxu0 0.0
    %368 = vmatprep.subr.mxu0 0.0
    %369 = vmatpush2.msra.mxu0 0.0
    %370 = vmatprep.subr.mxu0 0.0
    %371 = vmatpush2.msra.mxu0 0.0
    %372 = vmatprep.subr.mxu0 0.0
    %373 = vmatpush2.msra.mxu0 0.0
    %374 = vmatprep.subr.mxu0 0.0
    %375 = vmatpush2.msra.mxu0 0.0
    %376 = vmatprep.subr.mxu0 0.0
    %377 = vmatpush2.msra.mxu0 0.0
    %378 = vmatprep.subr.mxu0 0.0
    %379 = vmatpush2.msra.mxu0 0.0
    %380 = vmatprep.subr.mxu0 0.0
    %381 = vmatpush2.msra.mxu0 0.0
    %382 = vmatprep.subr.mxu0 0.0
    %383 = vmatpush2.msra.mxu0 0.0
    %384 = vmatprep.subr.mxu0 0.0
    %385 = vmatpush2.msra.mxu0 0.0
    %386 = vmatprep.subr.mxu0 0.0
    %387 = vmatpush2.msra.mxu0 0.0
    %388 = vmatprep.subr.mxu0 0.0
    %389 = vmatpush2.msra.mxu0 0.0
    %390 = vmatprep.subr.mxu0 0.0
    %391 = vmatpush2.msra.mxu0 0.0
    %392 = vmatprep.subr.mxu0 0.0
    %393 = vmatpush2.msra.mxu0 0.0
    %394 = vmatprep.mubr.f32.mxu0 0.0
    %395 = vmatmul.mubr.f32.gmra.mxu0 %v328
    %v396 = vpop.f32.mrf.mxu0
    %v397 = vadd.f32 0.0, %v396
    %v398 = vpop.f32.mrf.mxu0
    %399 = vdwg.mxu0
    %400 = vrot.lane.b32.xlu0 %v108, 96
    %v401 = vpop.permute.xlu0 %400
    %v404 = vsel %vm301, %v323, 0
    %406 = vmatprep.subr.mxu0 0.0
    %407 = vmatpush1.msra.mxu0 0.0
    %408 = vmatprep.subr.mxu0 0.0
    %409 = vmatpush1.msra.mxu0 0.0
    %410 = vmatprep.subr.mxu0 0.0
    %411 = vmatpush1.msra.mxu0 0.0
    %412 = vmatprep.subr.mxu0 0.0
    %413 = vmatpush1.msra.mxu0 0.0
    %414 = vmatprep.subr.mxu0 0.0
    %415 = vmatpush1.msra.mxu0 0.0
    %416 = vmatprep.subr.mxu0 0.0
    %417 = vmatpush1.msra.mxu0 0.0
    %418 = vmatprep.subr.mxu0 0.0
    %419 = vmatpush1.msra.mxu0 0.0
    %420 = vmatprep.subr.mxu0 0.0
    %421 = vmatpush1.msra.mxu0 0.0
    %422 = vmatprep.subr.mxu0 0.0
    %423 = vmatpush1.msra.mxu0 0.0
    %424 = vmatprep.subr.mxu0 0.0
    %425 = vmatpush1.msra.mxu0 0.0
    %426 = vmatprep.subr.mxu0 0.0
    %427 = vmatpush1.msra.mxu0 0.0
    %428 = vmatprep.subr.mxu0 0.0
    %429 = vmatpush1.msra.mxu0 0.0
    %430 = vmatprep.subr.mxu0 0.0
    %431 = vmatpush1.msra.mxu0 0.0
    %432 = vmatprep.subr.mxu0 0.0
    %433 = vmatpush1.msra.mxu0 0.0
    %434 = vmatprep.subr.mxu0 0.0
    %435 = vmatpush1.msra.mxu0 0.0
    %436 = vmatprep.subr.mxu0 0.0
    %437 = vmatpush1.msra.mxu0 %v401
    %438 = vmatprep.subr.mxu0 0.0
    %439 = vmatpush2.msra.mxu0 0.0
    %440 = vmatprep.subr.mxu0 0.0
    %441 = vmatpush2.msra.mxu0 0.0
    %442 = vmatprep.subr.mxu0 0.0
    %443 = vmatpush2.msra.mxu0 0.0
    %444 = vmatprep.subr.mxu0 0.0
    %445 = vmatpush2.msra.mxu0 0.0
    %446 = vmatprep.subr.mxu0 0.0
    %447 = vmatpush2.msra.mxu0 0.0
    %448 = vmatprep.subr.mxu0 0.0
    %449 = vmatpush2.msra.mxu0 0.0
    %450 = vmatprep.subr.mxu0 0.0
    %451 = vmatpush2.msra.mxu0 0.0
    %452 = vmatprep.subr.mxu0 0.0
    %453 = vmatpush2.msra.mxu0 0.0
    %454 = vmatprep.subr.mxu0 0.0
    %455 = vmatpush2.msra.mxu0 0.0
    %456 = vmatprep.subr.mxu0 0.0
    %457 = vmatpush2.msra.mxu0 0.0
    %458 = vmatprep.subr.mxu0 0.0
    %459 = vmatpush2.msra.mxu0 0.0
    %460 = vmatprep.subr.mxu0 0.0
    %461 = vmatpush2.msra.mxu0 0.0
    %462 = vmatprep.subr.mxu0 0.0
    %463 = vmatpush2.msra.mxu0 0.0
    %464 = vmatprep.subr.mxu0 0.0
    %465 = vmatpush2.msra.mxu0 0.0
    %466 = vmatprep.subr.mxu0 0.0
    %467 = vmatpush2.msra.mxu0 0.0
    %468 = vmatprep.subr.mxu0 0.0
    %469 = vmatpush2.msra.mxu0 0.0
    %470 = vmatprep.mubr.f32.mxu0 0.0
    %471 = vmatmul.mubr.f32.gmra.mxu0 %v404
    %v472 = vpop.f32.mrf.mxu0
    %v473 = vadd.f32 0.0, %v472
    %v474 = vpop.f32.mrf.mxu0
    %475 = vdwg.mxu0
    %476 = vst.msk [vmem:[#allocation2] sm:$0xff] %vm114, %v397
    %477 = vst.msk [vmem:[#allocation2 + $0x8] sm:$0xff] %vm114, %v473
    // Predicated region
    $region14: #{tpu_custom_call.1} parent=1 // pred_check
      _
    $region15: #{tpu_custom_call.1} parent=1 // pred_check_branch
      %479 = sbr.rel (0) target = $region17
    $region16: #{tpu_custom_call.1} parent=1 // pred_region
      %s481 = ssub.s32 256, 256
      %482 = vsyncadd [#allocation3], %s481
      %s483 = sshll.u32 [#allocation2], 4
      %s484 = int_to_ptr.vmem [resolvable:$true] %s483
      %489 = dma.vmem_to_hbm [thread:$0]  %s484, 256, %s3, [#allocation3], 128, 128, 8
    $region17: #{tpu_custom_call.1} parent=1 // pred_fallthru
      _
    // Predicated region
    $region18: #{tpu_custom_call.1} parent=1 // pred_check
      _
    $region19: #{tpu_custom_call.1} parent=1 // pred_check_branch
      %491 = sbr.rel (0) target = $region21
    $region20: #{tpu_custom_call.1} parent=1 // pred_region
      %492 = dma.done [#allocation3], 256
    $region21: #{tpu_custom_call.1} parent=1 // pred_fallthru
      _
    %493 = vsyncpa [#allocation3], 1

</llo_original>
